<compile_context>
chip_gen: v7x
topology: tpu7x:2x2x1
jax: 0.10.0
libtpu: 0.0.40
codegen_flags: <defaults>
</compile_context>

<pallas_src>
import functools

import jax
import jax.numpy as jnp
from jax.experimental import pallas as pl
from jax.experimental.pallas import tpu as pltpu


def _lsce_kernel(preds_ref, tgt_ref, neg_ref, nll_ref, *, n_rows):
    """Per-grid-step partial sums of -sum(log_softmax) and nll over valid rows."""
    tile_n = preds_ref.shape[0]
    i = pl.program_id(0)

    x = preds_ref[...].astype(jnp.float32)                 # (tile_n, C)
    t = tgt_ref[...]                                        # (tile_n, 1) int32
    c = x.shape[-1]

    # logsumexp pieces; `shifted` is the only full-width intermediate kept live.
    m = jnp.max(x, axis=-1, keepdims=True)                  # (tile_n, 1)
    shifted = x - m
    lse = jnp.log(jnp.sum(jnp.exp(shifted), axis=-1, keepdims=True))
    sum_sh = jnp.sum(shifted, axis=-1, keepdims=True)       # (tile_n, 1)

    # Gather shifted[row, target[row]] via a (1, C) iota compare (VPU-friendly,
    # no XLU gather; iota is one lane-row, broadcast against (tile_n, 1) t).
    col_ids = jax.lax.broadcasted_iota(jnp.int32, (1, c), 1)
    sh_t = jnp.sum(jnp.where(col_ids == t, shifted, 0.0), axis=-1, keepdims=True)

    # -sum(log_preds) = C*lse - sum(shifted);  -log_preds[target] = lse - shifted_t
    neg_row = jnp.float32(c) * lse - sum_sh                  # (tile_n, 1)
    nll_row = lse - sh_t                                     # (tile_n, 1)

    # Mask rows past N: the ragged last tile is read with unspecified padding.
    row_ids = jax.lax.broadcasted_iota(jnp.int32, (tile_n, 1), 0) + i * tile_n
    valid = row_ids < n_rows
    neg_row = jnp.where(valid, neg_row, 0.0)
    nll_row = jnp.where(valid, nll_row, 0.0)

    # One scalar partial per grid step (cross-sublane reduce -> XLU, has slack).
    neg_ref[...] = jnp.sum(neg_row, axis=0, keepdims=True).reshape(1, 1, 1)
    nll_ref[...] = jnp.sum(nll_row, axis=0, keepdims=True).reshape(1, 1, 1)


def _round_up(a, b):
    return ((a + b - 1) // b) * b


@functools.partial(jax.jit, static_argnames=("epsilon", "block_rows"))
def label_smoothing_cross_entropy(preds, target, epsilon: float = 0.1,
                                  block_rows=None):
    """preds: (N, C) float; target: (N,) int. Returns scalar f32 (mean reduction)."""
    N, C = preds.shape
    itemsize = jnp.dtype(preds.dtype).itemsize
    # Sublane alignment: f32 -> 8, bf16 -> 16, int8/fp8 -> 32.
    row_align = {4: 8, 2: 16, 1: 32}.get(itemsize, 8)

    if block_rows is None:
        # Row tile: largest multiple of row_align with <= ~8 MiB per preds
        # pipeline buffer; capped at 4096 rows so the lane-padded (tile_n, 1)
        # int32 target buffer stays <= 2 MiB. Total resident VMEM
        # (double-buffered preds + target + scalar partials) <= ~20 MiB.
        budget_bytes = 8 * 1024 * 1024
        tile_n = (budget_bytes // max(C * itemsize, 1)) // row_align * row_align
        tile_n = max(row_align, min(tile_n, 4096))
    else:
        tile_n = max(row_align, _round_up(int(block_rows), row_align))
    tile_n = min(tile_n, _round_up(N, row_align))

    # No padding of preds: ceil-div grid; the ragged last block is masked
    # in-kernel. target is viewed as (N, 1) (metadata-only reshape).
    n_grid = pl.cdiv(N, tile_n)
    tgt2d = target.astype(jnp.int32).reshape(N, 1)

    cost = pl.CostEstimate(
        flops=6 * N * C,
        transcendentals=N * C,
        bytes_accessed=N * C * itemsize + N * 4 + 8 * n_grid,
    )

    kernel = functools.partial(_lsce_kernel, n_rows=N)

    neg_p, nll_p = pl.pallas_call(
        kernel,
        out_shape=(
            jax.ShapeDtypeStruct((n_grid, 1, 1), jnp.float32),
            jax.ShapeDtypeStruct((n_grid, 1, 1), jnp.float32),
        ),
        grid_spec=pltpu.PrefetchScalarGridSpec(
            num_scalar_prefetch=0,
            grid=(n_grid,),
            in_specs=[
                pl.BlockSpec((tile_n, C), lambda i: (i, 0)),     # preds tile
                pl.BlockSpec((tile_n, 1), lambda i: (i, 0)),     # target tile
            ],
            out_specs=(
                pl.BlockSpec((1, 1, 1), lambda i: (i, 0, 0)),    # partial -sum(log_preds)
                pl.BlockSpec((1, 1, 1), lambda i: (i, 0, 0)),    # partial nll
            ),
        ),
        compiler_params=pltpu.CompilerParams(
            dimension_semantics=("parallel",),                   # no cross-step carry
            vmem_limit_bytes=32 * 1024 * 1024,
        ),
        cost_estimate=cost,
    )(preds, tgt2d)

    # Tiny scalar finish in plain JAX: sum per-step partials, mean, blend.
    inv_n = jnp.float32(1.0 / N)
    loss = jnp.sum(neg_p) * inv_n
    nll = jnp.sum(nll_p) * inv_n
    return epsilon * (loss / C) + (1.0 - epsilon) * nll


def _reference(preds, target, epsilon=0.1):
    log_preds = jax.nn.log_softmax(preds.astype(jnp.float32), axis=-1)
    loss = jnp.mean(-jnp.sum(log_preds, axis=-1))
    nll = jnp.mean(-jnp.take_along_axis(log_preds, target[:, None], axis=-1))
    n = preds.shape[-1]
    return epsilon * (loss / n) + (1.0 - epsilon) * nll


if __name__ == "__main__":
    key = jax.random.PRNGKey(0)
    k1, k2 = jax.random.split(key)

    N, C = 16, 32
    preds = jax.random.normal(k1, (N, C), dtype=jnp.float32)
    target = jax.random.randint(k2, (N,), 0, C, dtype=jnp.int32)
    out = jax.block_until_ready(label_smoothing_cross_entropy(preds, target, epsilon=0.1))
    ref = _reference(preds, target, epsilon=0.1)
    assert jnp.allclose(out, ref, rtol=1e-5, atol=1e-5), (out, ref)

    # Ragged batch (no-pad path: ceil-div grid + in-kernel row mask).
    N2 = 13
    preds2 = jax.random.normal(k1, (N2, C), dtype=jnp.float32)
    target2 = jax.random.randint(k2, (N2,), 0, C, dtype=jnp.int32)
    out2 = jax.block_until_ready(label_smoothing_cross_entropy(preds2, target2))
    ref2 = _reference(preds2, target2)
    assert jnp.allclose(out2, ref2, rtol=1e-5, atol=1e-5), (out2, ref2)

    # Multi-step grid with a ragged last tile (forces tile_n=8 -> grid of 3).
    N3 = 20
    preds3 = jax.random.normal(k1, (N3, C), dtype=jnp.float32)
    target3 = jax.random.randint(k2, (N3,), 0, C, dtype=jnp.int32)
    out3 = jax.block_until_ready(
        label_smoothing_cross_entropy(preds3, target3, block_rows=8))
    ref3 = _reference(preds3, target3)
    assert jnp.allclose(out3, ref3, rtol=1e-5, atol=1e-5), (out3, ref3)

    print("KERNEL_OK")
</pallas_src>

<mosaic_0001>
module attributes {stable_mosaic.version = 11 : i64} {
  func.func @_lsce_kernel(%arg0: i32, %arg1: memref<16x32xf32, #tpu.memory_space<vmem>>, %arg2: memref<16x1xi32, #tpu.memory_space<vmem>>, %arg3: memref<1x1x1xf32, #tpu.memory_space<vmem>>, %arg4: memref<1x1x1xf32, #tpu.memory_space<vmem>>) attributes {dimension_semantics = [#tpu.dimension_semantics<parallel>], iteration_bounds = array<i64: 1>, scalar_prefetch = 0 : i64, scratch_operands = 0 : i64, tpu.core_type = #tpu.core_type<tc>, window_params = [{transform_indices = @transform_0, window_bounds = array<i64: 16, 32>}, {transform_indices = @transform_1, window_bounds = array<i64: 16, 1>}, {transform_indices = @transform_2, window_bounds = array<i64: 1, 1, 1>}, {transform_indices = @transform_3, window_bounds = array<i64: 1, 1, 1>}]} {
    %c0 = arith.constant 0 : index
    %c0_0 = arith.constant 0 : index
    %0 = vector.load %arg1[%c0, %c0_0] : memref<16x32xf32, #tpu.memory_space<vmem>>, vector<16x32xf32>
    %c0_1 = arith.constant 0 : index
    %c0_2 = arith.constant 0 : index
    %1 = vector.load %arg2[%c0_1, %c0_2] : memref<16x1xi32, #tpu.memory_space<vmem>>, vector<16x1xi32>
    %cst = arith.constant dense<0xFF800000> : vector<16xf32>
    %2 = vector.multi_reduction <maximumf>, %0, %cst [1] : vector<16x32xf32> to vector<16xf32>
    %3 = vector.shape_cast %2 : vector<16xf32> to vector<16x1xf32>
    %4 = vector.broadcast %3 : vector<16x1xf32> to vector<16x32xf32>
    %5 = arith.subf %0, %4 : vector<16x32xf32>
    %6 = math.exp %5 : vector<16x32xf32>
    %cst_3 = arith.constant dense<0.000000e+00> : vector<16xf32>
    %7 = vector.multi_reduction <add>, %6, %cst_3 [1] : vector<16x32xf32> to vector<16xf32>
    %8 = vector.shape_cast %7 : vector<16xf32> to vector<16x1xf32>
    %9 = math.log %8 : vector<16x1xf32>
    %cst_4 = arith.constant dense<0.000000e+00> : vector<16xf32>
    %10 = vector.multi_reduction <add>, %5, %cst_4 [1] : vector<16x32xf32> to vector<16xf32>
    %11 = vector.shape_cast %10 : vector<16xf32> to vector<16x1xf32>
    %12 = tpu.iota {dimensions = array<i32: 1>} : vector<1x32xi32>
    %13 = vector.broadcast %12 : vector<1x32xi32> to vector<16x32xi32>
    %14 = vector.broadcast %1 : vector<16x1xi32> to vector<16x32xi32>
    %15 = arith.cmpi eq, %13, %14 : vector<16x32xi32>
    %cst_5 = arith.constant 0.000000e+00 : f32
    %16 = vector.broadcast %cst_5 : f32 to vector<16x32xf32>
    %17 = arith.select %15, %5, %16 : vector<16x32xi1>, vector<16x32xf32>
    %cst_6 = arith.constant dense<0.000000e+00> : vector<16xf32>
    %18 = vector.multi_reduction <add>, %17, %cst_6 [1] : vector<16x32xf32> to vector<16xf32>
    %19 = vector.shape_cast %18 : vector<16xf32> to vector<16x1xf32>
    %cst_7 = arith.constant 3.200000e+01 : f32
    %20 = vector.broadcast %cst_7 : f32 to vector<16x1xf32>
    %21 = arith.mulf %20, %9 : vector<16x1xf32>
    %22 = arith.subf %21, %11 : vector<16x1xf32>
    %23 = arith.subf %9, %19 : vector<16x1xf32>
    %24 = tpu.iota {dimensions = array<i32: 0>} : vector<16x1xi32>
    %c16_i32 = arith.constant 16 : i32
    %25 = arith.muli %arg0, %c16_i32 : i32
    %26 = vector.broadcast %25 : i32 to vector<16x1xi32>
    %27 = arith.addi %24, %26 : vector<16x1xi32>
    %c16_i32_8 = arith.constant 16 : i32
    %28 = vector.broadcast %c16_i32_8 : i32 to vector<16x1xi32>
    %29 = arith.cmpi slt, %27, %28 : vector<16x1xi32>
    %cst_9 = arith.constant 0.000000e+00 : f32
    %30 = vector.broadcast %cst_9 : f32 to vector<16x1xf32>
    %31 = arith.select %29, %22, %30 : vector<16x1xi1>, vector<16x1xf32>
    %cst_10 = arith.constant 0.000000e+00 : f32
    %32 = vector.broadcast %cst_10 : f32 to vector<16x1xf32>
    %33 = arith.select %29, %23, %32 : vector<16x1xi1>, vector<16x1xf32>
    %cst_11 = arith.constant dense<0.000000e+00> : vector<1xf32>
    %34 = vector.multi_reduction <add>, %31, %cst_11 [0] : vector<16x1xf32> to vector<1xf32>
    %35 = vector.shape_cast %34 : vector<1xf32> to vector<1x1xf32>
    %36 = vector.shape_cast %35 : vector<1x1xf32> to vector<1x1x1xf32>
    %c0_12 = arith.constant 0 : index
    %c0_13 = arith.constant 0 : index
    %c0_14 = arith.constant 0 : index
    %37 = vector.load %arg3[%c0_12, %c0_13, %c0_14] : memref<1x1x1xf32, #tpu.memory_space<vmem>>, vector<1x1x1xf32>
    tpu.vector_store %arg3[%c0_12, %c0_13, %c0_14], %36 {strides = array<i32>} : memref<1x1x1xf32, #tpu.memory_space<vmem>>, vector<1x1x1xf32>,
    %cst_15 = arith.constant dense<0.000000e+00> : vector<1xf32>
    %38 = vector.multi_reduction <add>, %33, %cst_15 [0] : vector<16x1xf32> to vector<1xf32>
    %39 = vector.shape_cast %38 : vector<1xf32> to vector<1x1xf32>
    %40 = vector.shape_cast %39 : vector<1x1xf32> to vector<1x1x1xf32>
    %c0_16 = arith.constant 0 : index
    %c0_17 = arith.constant 0 : index
    %c0_18 = arith.constant 0 : index
    %41 = vector.load %arg4[%c0_16, %c0_17, %c0_18] : memref<1x1x1xf32, #tpu.memory_space<vmem>>, vector<1x1x1xf32>
    tpu.vector_store %arg4[%c0_16, %c0_17, %c0_18], %40 {strides = array<i32>} : memref<1x1x1xf32, #tpu.memory_space<vmem>>, vector<1x1x1xf32>,
    return
  }
  func.func @transform_0(%arg0: i32) -> (i32, i32) {
    %c0_i32 = arith.constant 0 : i32
    %c0_i32_0 = arith.constant 0 : i32
    return %arg0, %c0_i32 : i32, i32
  }
  func.func @transform_1(%arg0: i32) -> (i32, i32) {
    %c0_i32 = arith.constant 0 : i32
    %c0_i32_0 = arith.constant 0 : i32
    return %arg0, %c0_i32 : i32, i32
  }
  func.func @transform_2(%arg0: i32) -> (i32, i32, i32) {
    %c0_i32 = arith.constant 0 : i32
    %c0_i32_0 = arith.constant 0 : i32
    %c0_i32_1 = arith.constant 0 : i32
    return %arg0, %c0_i32, %c0_i32_0 : i32, i32, i32
  }
  func.func @transform_3(%arg0: i32) -> (i32, i32, i32) {
    %c0_i32 = arith.constant 0 : i32
    %c0_i32_0 = arith.constant 0 : i32
    %c0_i32_1 = arith.constant 0 : i32
    return %arg0, %c0_i32, %c0_i32_0 : i32, i32, i32
  }
}

</mosaic_0001>

<llo_original>
// kernel: label_smoothing_cross_entropy.1
$region0: #{label_smoothing_cross_entropy.1}
  #allocation0 [shape = 'u32[]', space=smem, size = 0x4, offset = 0x4, fixed_abs, tag = 'smem constant byte address 0x4 - core index']
  #allocation1 [shape = 'u32[144,128]{1,0:T(1,128)}', space=vmem, size = 0x12000, scoped, tag = 'internal scratch']
  %s0 = inlined_call_operand.vmem [shape: f32[16,32], index: 0, kind: input, shape index: {}]
  %s1 = inlined_call_operand.vmem [shape: s32[16,1], index: 1, kind: input, shape index: {}]
  %s2 = inlined_call_operand.hbm [shape: f32[1,1,1], index: 2, kind: output, shape index: {0}]
  %s3 = inlined_call_operand.hbm [shape: f32[1,1,1], index: 3, kind: output, shape index: {1}]
  %4 = xla_tuple %s2, %s3
  %s5 = sld [smem:[#allocation0]]
  $region26: #{label_smoothing_cross_entropy.1} parent=0
    _
  %s7 = ssub.s32 1, %s5
  %s8 = scalar_select 0, %s7, %s5
  $region1: #{label_smoothing_cross_entropy.1} parent=0
    #allocation2 [shape = 'u8[512]{0}', space=vmem, size = 0x400, scoped, tag = 'output window, operand 0, single buffered']
    #allocation3 [shape = 's32[1]{0}', space=sflag, size = 0x4, scoped, tag = 'scoped memory for label_smoothing_cross_entropy.1']
    #allocation4 [shape = 'u8[512]{0}', space=vmem, size = 0x400, scoped, tag = 'output window, operand 1, single buffered']
    #allocation5 [shape = 's32[1]{0}', space=sflag, size = 0x4, scoped, tag = 'scoped memory for label_smoothing_cross_entropy.1']
    %9 = vsyncpa [#allocation3], 0
    %10 = vsyncpa [#allocation5], 0
    // Predicated region
    $region2: #{label_smoothing_cross_entropy.1} parent=1 // pred_check
      _
    $region3: #{label_smoothing_cross_entropy.1} parent=1 // pred_check_branch
      %12 = sbr.rel (0) target = $region5
    $region4: #{label_smoothing_cross_entropy.1} parent=1 // pred_region
      _
    $region5: #{label_smoothing_cross_entropy.1} parent=1 // pred_fallthru
      _
    // Predicated region
    $region6: #{label_smoothing_cross_entropy.1} parent=1 // pred_check
      _
    $region7: #{label_smoothing_cross_entropy.1} parent=1 // pred_check_branch
      %14 = sbr.rel (0) target = $region9
    $region8: #{label_smoothing_cross_entropy.1} parent=1 // pred_region
      _
    $region9: #{label_smoothing_cross_entropy.1} parent=1 // pred_fallthru
      _
    %v15 = vld [vmem:[%s0] sm:$0xff]
    %v16 = vld [vmem:[%s0 + $0x8] sm:$0xff]
    %v17 = vld [vmem:[%s1] sm:$0xff]
    %v18 = vld [vmem:[%s1 + $0x8] sm:$0xff]
    %vm19 = vcmask 261120
    %v20 = vsel %vm19, %v15, -inf
    %21 = vmax.xlane.f32.xlu0 %v20
    %v22 = vpop.xlane.xlu0 %21
    %v23 = vsel %vm19, %v16, -inf
    %24 = vmax.xlane.f32.xlu0 %v23
    %v25 = vpop.xlane.xlu0 %24
    %v26 = vsub.f32 %v15, %v22
    %v27 = vsub.f32 %v16, %v25
    %v28 = vmul.f32 %v26, 1.442695
    %v29 = vpow.pop %v28
    %v30 = vmul.f32 %v27, 1.442695
    %v31 = vpow.pop %v30
    %v32 = vsel %vm19, %v29, 0.0
    %33 = vadd.xlane.f32.xlu0 %v32
    %v34 = vpop.xlane.xlu0 %33
    %v35 = vsel %vm19, %v31, 0.0
    %36 = vadd.xlane.f32.xlu0 %v35
    %v37 = vpop.xlane.xlu0 %36
    %v38 = vlog2.pop %v34
    %v39 = vmul.f32 %v38, 0.6931472
    %v40 = vlog2.pop %v37
    %v41 = vmul.f32 %v40, 0.6931472
    %v42 = vsel %vm19, %v26, 0.0
    %43 = vadd.xlane.f32.xlu0 %v42
    %v44 = vpop.xlane.xlu0 %43
    %v45 = vsel %vm19, %v27, 0.0
    %46 = vadd.xlane.f32.xlu0 %v45
    %v47 = vpop.xlane.xlu0 %46
    %v48 = vlaneseq
    %v49 = vand.u32 %v48, 127
    %50 = vset.pattern.permute.xlu0 0
    %51 = vperm.xlu0 %50, %v17
    %v52 = vpop.permute.xlu0 %51
    %53 = vset.pattern.permute.xlu0 0
    %54 = vperm.xlu0 %53, %v18
    %v55 = vpop.permute.xlu0 %54
    %vm56 = vcmp.eq.s32.totalorder %v49, %v52
    %vm57 = vcmp.eq.s32.totalorder %v49, %v55
    %v58 = vsel %vm56, %v26, 0.0
    %v59 = vsel %vm57, %v27, 0.0
    %v60 = vsel %vm19, %v58, 0.0
    %61 = vadd.xlane.f32.xlu0 %v60
    %v62 = vpop.xlane.xlu0 %61
    %v63 = vsel %vm19, %v59, 0.0
    %64 = vadd.xlane.f32.xlu0 %v63
    %v65 = vpop.xlane.xlu0 %64
    %v66 = vmul.f32 %v39, 32.0
    %v67 = vmul.f32 %v41, 32.0
    %v68 = vsub.f32 %v66, %v44
    %v69 = vsub.f32 %v67, %v47
    %v70 = vsub.f32 %v39, %v62
    %v71 = vsub.f32 %v41, %v65
    %v72 = vlaneseq
    %v73 = vshrl.u32 %v72, 7
    %v74 = vadd.s32 %v73, 8
    %s75 = smul.u32 0, 16
    %v76 = vstv %s75
    %v77 = vadd.s32 %v73, %v76
    %v78 = vadd.s32 %v74, %v76
    %vm79 = vcmp.lt.s32.totalorder %v77, 16
    %vm80 = vcmp.lt.s32.totalorder %v78, 16
    %v81 = vsel %vm79, %v68, 0.0
    %v82 = vsel %vm80, %v69, 0.0
    %v83 = vsel %vm79, %v70, 0.0
    %v84 = vsel %vm80, %v71, 0.0
    %v85 = vadd.f32 %v81, %v82
    %v86 = vrot.slane %v85, 4
    %v87 = vadd.f32 %v85, %v86
    %v88 = vrot.slane %v87, 2
    %v89 = vadd.f32 %v87, %v88
    %v90 = vrot.slane %v89, 1
    %v91 = vadd.f32 %v89, %v90
    %vm92 = vcmask 0
    %93 = vst.msk [vmem:[#allocation2] sm:$0x1] %vm92, %v91
    %v94 = vadd.f32 %v83, %v84
    %v95 = vrot.slane %v94, 4
    %v96 = vadd.f32 %v94, %v95
    %v97 = vrot.slane %v96, 2
    %v98 = vadd.f32 %v96, %v97
    %v99 = vrot.slane %v98, 1
    %v100 = vadd.f32 %v98, %v99
    %101 = vst.msk [vmem:[#allocation4] sm:$0x1] %vm92, %v100
    // Predicated region
    $region10: #{label_smoothing_cross_entropy.1} parent=1 // pred_check
      _
    $region11: #{label_smoothing_cross_entropy.1} parent=1 // pred_check_branch
      %103 = sbr.rel (0) target = $region13
    $region12: #{label_smoothing_cross_entropy.1} parent=1 // pred_region
      %s105 = ssub.s32 16, 16
      %106 = vsyncadd [#allocation3], %s105
      %s108 = sshll.u32 [#allocation2], 4
      %s109 = int_to_ptr.vmem [resolvable:$true] %s108
      %111 = dma.vmem_to_hbm [thread:$0]  %s109, 16, %s2, [#allocation3]
    $region13: #{label_smoothing_cross_entropy.1} parent=1 // pred_fallthru
      _
    // Predicated region
    $region14: #{label_smoothing_cross_entropy.1} parent=1 // pred_check
      _
    $region15: #{label_smoothing_cross_entropy.1} parent=1 // pred_check_branch
      %113 = sbr.rel (0) target = $region17
    $region16: #{label_smoothing_cross_entropy.1} parent=1 // pred_region
      %s115 = ssub.s32 16, 16
      %116 = vsyncadd [#allocation5], %s115
      %s118 = sshll.u32 [#allocation4], 4
      %s119 = int_to_ptr.vmem [resolvable:$true] %s118
      %121 = dma.vmem_to_hbm [thread:$0]  %s119, 16, %s3, [#allocation5]
    $region17: #{label_smoothing_cross_entropy.1} parent=1 // pred_fallthru
      _
    // Predicated region
    $region18: #{label_smoothing_cross_entropy.1} parent=1 // pred_check
      _
    $region19: #{label_smoothing_cross_entropy.1} parent=1 // pred_check_branch
      %123 = sbr.rel (0) target = $region21
    $region20: #{label_smoothing_cross_entropy.1} parent=1 // pred_region
      %124 = dma.done [#allocation3], 16
    $region21: #{label_smoothing_cross_entropy.1} parent=1 // pred_fallthru
      _
    // Predicated region
    $region22: #{label_smoothing_cross_entropy.1} parent=1 // pred_check
      _
    $region23: #{label_smoothing_cross_entropy.1} parent=1 // pred_check_branch
      %126 = sbr.rel (0) target = $region25
    $region24: #{label_smoothing_cross_entropy.1} parent=1 // pred_region
      %127 = dma.done [#allocation5], 16
    $region25: #{label_smoothing_cross_entropy.1} parent=1 // pred_fallthru
      _
    %128 = vsyncpa [#allocation3], 1
    %129 = vsyncpa [#allocation5], 1

</llo_original>
